<compile_context>
chip_gen: v5e
topology: v5e:2x2
jax: 0.10.0
libtpu: 0.0.40
codegen_flags: <defaults>
</compile_context>

<pallas_src>
import functools
import math

import jax
import jax.numpy as jnp
from jax.experimental import pallas as pl
from jax.experimental.pallas import tpu as pltpu

LANE = 128
SUBLANE = 8
MAX_TM = 1024                       # batch rows per grid step (upper bound)
VMEM_TARGET_BYTES = 24 * 1024 * 1024  # conservative per-step working-set target


def _round_up(n, m):
    return ((n + m - 1) // m) * m


# ------------------------------ fused kernel ---------------------------------
def _sae_fused_kernel(*refs, n_enc, n_dec):
    """refs = (x_ref, w0, b0, w1, b1, ..., recon_ref, latent_ref).

    Chains y = x @ W + b with ReLU after every layer except the two projection
    layers (encoder->latent, decoder->input), matching the PyTorch SAE.
    Matmuls run with bf16 operands on the MXU, accumulate in f32; bias-add and
    ReLU run on the f32 accumulator (VPU).  Latent and reconstruction are
    written to lane-dense padded output slabs.
    """
    n_layers = n_enc + n_dec
    x_ref = refs[0]
    wb = refs[1:1 + 2 * n_layers]
    recon_ref = refs[1 + 2 * n_layers]
    latent_ref = refs[2 + 2 * n_layers]

    h = x_ref[...].astype(jnp.float32)

    # encoder
    for i in range(n_enc):
        w = wb[2 * i][...]            # bf16
        b = wb[2 * i + 1][...]        # f32
        h = jnp.dot(h.astype(jnp.bfloat16), w,
                    preferred_element_type=jnp.float32) + b
        if i < n_enc - 1:
            h = jnp.maximum(h, 0.0)
    latent_ref[...] = h.astype(latent_ref.dtype)

    # decoder
    for j in range(n_dec):
        li = n_enc + j
        w = wb[2 * li][...]
        b = wb[2 * li + 1][...]
        h = jnp.dot(h.astype(jnp.bfloat16), w,
                    preferred_element_type=jnp.float32) + b
        if j < n_dec - 1:
            h = jnp.maximum(h, 0.0)
    recon_ref[...] = h.astype(recon_ref.dtype)


# --------------------------- params & lane padding ----------------------------
def _init_linear(key, fan_in, fan_out, dtype=jnp.float32):
    """Mimics PyTorch nn.Linear default init (uniform +/- 1/sqrt(fan_in)).
    Stored as (in, out) so the kernel computes x @ W (== x @ W_pt.T)."""
    kw, kb = jax.random.split(key)
    bound = 1.0 / math.sqrt(fan_in)
    w = jax.random.uniform(kw, (fan_in, fan_out), dtype, minval=-bound, maxval=bound)
    b = jax.random.uniform(kb, (fan_out,), dtype, minval=-bound, maxval=bound)
    return w, b


def init_sae_params(key, input_dim, latent_space_dim, encoder_dims=(128,), decoder_dims=None):
    if decoder_dims is None:
        decoder_dims = list(reversed(list(encoder_dims)))
    enc_sizes = [input_dim] + list(encoder_dims) + [latent_space_dim]
    dec_sizes = [latent_space_dim] + list(decoder_dims) + [input_dim]
    keys = jax.random.split(key, (len(enc_sizes) - 1) + (len(dec_sizes) - 1))
    ki = iter(keys)
    encoder = [_init_linear(next(ki), enc_sizes[i], enc_sizes[i + 1])
               for i in range(len(enc_sizes) - 1)]
    decoder = [_init_linear(next(ki), dec_sizes[i], dec_sizes[i + 1])
               for i in range(len(dec_sizes) - 1)]
    return {"encoder": encoder, "decoder": decoder}


def pad_params_for_kernel(params, input_dim, lane_multiple=LANE):
    """Zero-pad each layer so every output width is a multiple of `lane_multiple`
    and each layer's input width matches the previous layer's padded output
    width.  Done ONCE, outside the forward.  Zero padding is exact: padded
    weight rows/cols and bias entries are zero, so padded activation lanes stay
    zero and are sliced off after the kernel.  Weights are stored bf16 (MXU
    native operand format); biases stay f32 (bias-add runs on the f32
    accumulator).

    NOTE(v6e/v7x): if model dims are negotiable, lane_multiple=256 matches the
    256x256 MXU; 128 is sufficient on v5e and is the default here.
    """
    layers = list(params["encoder"]) + list(params["decoder"])
    padded = []
    prev_out = input_dim  # first layer keeps the real input_dim as its K
    for (w, b) in layers:
        din, dout = w.shape
        din_p = max(prev_out, din)
        dout_p = _round_up(dout, lane_multiple)
        wp = jnp.pad(w, ((0, din_p - din), (0, dout_p - dout))).astype(jnp.bfloat16)
        bp = jnp.pad(b, (0, dout_p - dout)).reshape(1, dout_p).astype(jnp.float32)
        padded.append((wp, bp))
        prev_out = dout_p
    return padded


# ------------------------------ VMEM budgeting --------------------------------
def _vmem_working_set_bytes(tm, d_in, padded_layers, out_widths):
    """Rough per-grid-step VMEM working set: double-buffered streamed blocks
    (x tile + output tiles), resident weights/biases (2 buffers each by
    default), plus slack for the widest f32 intermediate activation."""
    wb_bytes = sum(w.size * w.dtype.itemsize + b.size * b.dtype.itemsize
                   for (w, b) in padded_layers)
    x_blk = tm * d_in * 4
    out_blk = tm * sum(out_widths) * 4
    widest = max(w.shape[1] for (w, _) in padded_layers)
    act = tm * widest * 4
    return 2 * (wb_bytes + x_blk + out_blk) + 4 * act


# ------------------------------ fused forward ---------------------------------
@functools.partial(jax.jit, static_argnames=("n_enc", "n_dec", "input_dim", "latent_dim"))
def sae_forward(x, padded_layers, *, n_enc, n_dec, input_dim, latent_dim):
    """Fused SAE forward. Returns (recon, latent), matching SAE.forward."""
    B, d_in = x.shape

    d_lat_pad = padded_layers[n_enc - 1][0].shape[1]
    d_rec_pad = padded_layers[-1][0].shape[1]
    out_widths = (d_rec_pad, d_lat_pad)

    # ---- batch tile selection ----
    tm = min(MAX_TM, _round_up(B, SUBLANE))
    # cap tile by an explicit VMEM budget (matters for real SAE dims / v7x)
    while tm > SUBLANE and _vmem_working_set_bytes(tm, d_in, padded_layers, out_widths) > VMEM_TARGET_BYTES:
        tm = max(SUBLANE, _round_up(tm // 2, SUBLANE))
    # guarantee >= 2 grid steps where possible so v7x's 2 TensorCores both work
    if _round_up(B, tm) // tm < 2 and B > SUBLANE:
        tm = min(tm, _round_up((B + 1) // 2, SUBLANE))

    Bp = _round_up(B, tm)
    if Bp != B:
        x = jnp.pad(x, ((0, Bp - B), (0, 0)))
    n_steps = Bp // tm

    # ---- specs ----
    in_specs = [pl.BlockSpec((tm, d_in), lambda i: (i, 0))]
    flat_wb = []
    for (w, b) in padded_layers:
        # constant block index -> weights/biases stay VMEM-resident across grid
        in_specs.append(pl.BlockSpec(w.shape, lambda i: (0, 0)))
        in_specs.append(pl.BlockSpec(b.shape, lambda i: (0, 0)))
        flat_wb.append(w)
        flat_wb.append(b)

    out_specs = (
        pl.BlockSpec((tm, d_rec_pad), lambda i: (i, 0)),
        pl.BlockSpec((tm, d_lat_pad), lambda i: (i, 0)),
    )

    # ---- cost estimate (lets XLA overlap the custom call) ----
    flops = 2 * Bp * sum(w.shape[0] * w.shape[1] for (w, _) in padded_layers)
    bytes_accessed = (
        Bp * d_in * x.dtype.itemsize
        + sum(w.size * w.dtype.itemsize + b.size * b.dtype.itemsize
              for (w, b) in padded_layers)
        + Bp * (d_rec_pad + d_lat_pad) * x.dtype.itemsize
    )
    cost = pl.CostEstimate(flops=int(flops), transcendentals=0,
                           bytes_accessed=int(bytes_accessed))

    # explicit VMEM limit with headroom (never below the 32 MiB default)
    budget = _vmem_working_set_bytes(tm, d_in, padded_layers, out_widths)
    vmem_limit = max(32 * 1024 * 1024, min(int(1.25 * budget), 96 * 1024 * 1024))

    kernel = functools.partial(_sae_fused_kernel, n_enc=n_enc, n_dec=n_dec)
    recon_p, latent_p = pl.pallas_call(
        kernel,
        out_shape=(
            jax.ShapeDtypeStruct((Bp, d_rec_pad), x.dtype),
            jax.ShapeDtypeStruct((Bp, d_lat_pad), x.dtype),
        ),
        grid=(n_steps,),
        in_specs=in_specs,
        out_specs=out_specs,
        compiler_params=pltpu.CompilerParams(
            # batch tiles are independent -> can shard across v7x's 2 TensorCores
            dimension_semantics=("parallel",),
            vmem_limit_bytes=vmem_limit,
        ),
        cost_estimate=cost,
    )(x, *flat_wb)

    recon = recon_p[:B, :input_dim]
    latent = latent_p[:B, :latent_dim]
    return recon, latent


# ----------------------------------- main --------------------------------------
if __name__ == "__main__":
    key = jax.random.PRNGKey(0)
    k_params, k_x = jax.random.split(key)

    batch = 256            # -> two 128-row tiles: exercises the parallel batch grid
    input_dim = 64
    latent_space_dim = 16
    encoder_dims = (128,)

    params = init_sae_params(k_params, input_dim, latent_space_dim, encoder_dims)
    padded_layers = pad_params_for_kernel(params, input_dim)
    x = jax.random.normal(k_x, (batch, input_dim), dtype=jnp.float32)

    n_enc = len(params["encoder"])
    n_dec = len(params["decoder"])

    recon, latent = sae_forward(
        x, padded_layers,
        n_enc=n_enc, n_dec=n_dec,
        input_dim=input_dim, latent_dim=latent_space_dim)
    jax.block_until_ready(recon)
    jax.block_until_ready(latent)

    # Pure-JAX f32 reference (same math, real-dim weights, no Pallas).
    def ref_forward(params, x):
        h = x
        n = len(params["encoder"])
        for i, (w, b) in enumerate(params["encoder"]):
            h = h @ w + b
            if i < n - 1:
                h = jnp.maximum(h, 0.0)
        lat = h
        n = len(params["decoder"])
        for i, (w, b) in enumerate(params["decoder"]):
            h = h @ w + b
            if i < n - 1:
                h = jnp.maximum(h, 0.0)
        return h, lat

    recon_ref, latent_ref = ref_forward(params, x)
    assert recon.shape == (batch, input_dim) and latent.shape == (batch, latent_space_dim)
    # Kernel uses bf16 MXU operands with f32 accumulation -> loosened tolerance
    # vs the f32 reference (error bounded by bf16 operand rounding).
    assert jnp.allclose(latent, latent_ref, atol=2e-2, rtol=2e-2), \
        float(jnp.max(jnp.abs(latent - latent_ref)))
    assert jnp.allclose(recon, recon_ref, atol=2e-2, rtol=2e-2), \
        float(jnp.max(jnp.abs(recon - recon_ref)))

    print("KERNEL_OK")
</pallas_src>

<mosaic_0001>
module attributes {stable_mosaic.version = 11 : i64} {
  func.func @_sae_fused_kernel(%arg0: i32, %arg1: memref<128x64xf32, #tpu.memory_space<vmem>>, %arg2: memref<64x128xbf16, #tpu.memory_space<vmem>>, %arg3: memref<1x128xf32, #tpu.memory_space<vmem>>, %arg4: memref<128x128xbf16, #tpu.memory_space<vmem>>, %arg5: memref<1x128xf32, #tpu.memory_space<vmem>>, %arg6: memref<128x128xbf16, #tpu.memory_space<vmem>>, %arg7: memref<1x128xf32, #tpu.memory_space<vmem>>, %arg8: memref<128x128xbf16, #tpu.memory_space<vmem>>, %arg9: memref<1x128xf32, #tpu.memory_space<vmem>>, %arg10: memref<128x128xf32, #tpu.memory_space<vmem>>, %arg11: memref<128x128xf32, #tpu.memory_space<vmem>>) attributes {dimension_semantics = [#tpu.dimension_semantics<parallel>], iteration_bounds = array<i64: 2>, scalar_prefetch = 0 : i64, scratch_operands = 0 : i64, tpu.core_type = #tpu.core_type<tc>, window_params = [{transform_indices = @transform_0, window_bounds = array<i64: 128, 64>}, {pipeline_mode = #tpu.pipeline_mode<synchronous>, transform_indices = @transform_1, window_bounds = array<i64: 64, 128>}, {pipeline_mode = #tpu.pipeline_mode<synchronous>, transform_indices = @transform_2, window_bounds = array<i64: 1, 128>}, {pipeline_mode = #tpu.pipeline_mode<synchronous>, transform_indices = @transform_3, window_bounds = array<i64: 128, 128>}, {pipeline_mode = #tpu.pipeline_mode<synchronous>, transform_indices = @transform_4, window_bounds = array<i64: 1, 128>}, {pipeline_mode = #tpu.pipeline_mode<synchronous>, transform_indices = @transform_5, window_bounds = array<i64: 128, 128>}, {pipeline_mode = #tpu.pipeline_mode<synchronous>, transform_indices = @transform_6, window_bounds = array<i64: 1, 128>}, {pipeline_mode = #tpu.pipeline_mode<synchronous>, transform_indices = @transform_7, window_bounds = array<i64: 128, 128>}, {pipeline_mode = #tpu.pipeline_mode<synchronous>, transform_indices = @transform_8, window_bounds = array<i64: 1, 128>}, {transform_indices = @transform_9, window_bounds = array<i64: 128, 128>}, {transform_indices = @transform_10, window_bounds = array<i64: 128, 128>}]} {
    %c0 = arith.constant 0 : index
    %c0_0 = arith.constant 0 : index
    %0 = vector.load %arg1[%c0, %c0_0] : memref<128x64xf32, #tpu.memory_space<vmem>>, vector<128x64xf32>
    %c0_1 = arith.constant 0 : index
    %c0_2 = arith.constant 0 : index
    %1 = vector.load %arg2[%c0_1, %c0_2] : memref<64x128xbf16, #tpu.memory_space<vmem>>, vector<64x128xbf16>
    %c0_3 = arith.constant 0 : index
    %c0_4 = arith.constant 0 : index
    %2 = vector.load %arg3[%c0_3, %c0_4] : memref<1x128xf32, #tpu.memory_space<vmem>>, vector<1x128xf32>
    %3 = arith.truncf %0 : vector<128x64xf32> to vector<128x64xbf16>
    %cst = arith.constant dense<0.000000e+00> : vector<128x128xf32>
    %4 = tpu.matmul %3, %1, %cst {dimension_numbers = #tpu.dot_dimension_numbers<[1], [0], [0], [1], [0, 0, 1, 1], [], []>} : vector<128x64xbf16>, vector<64x128xbf16>, vector<128x128xf32> -> vector<128x128xf32>
    %5 = vector.broadcast %2 : vector<1x128xf32> to vector<128x128xf32>
    %6 = arith.addf %4, %5 : vector<128x128xf32>
    %cst_5 = arith.constant 0.000000e+00 : f32
    %7 = vector.broadcast %cst_5 : f32 to vector<128x128xf32>
    %8 = arith.maximumf %6, %7 : vector<128x128xf32>
    %c0_6 = arith.constant 0 : index
    %c0_7 = arith.constant 0 : index
    %9 = vector.load %arg4[%c0_6, %c0_7] : memref<128x128xbf16, #tpu.memory_space<vmem>>, vector<128x128xbf16>
    %c0_8 = arith.constant 0 : index
    %c0_9 = arith.constant 0 : index
    %10 = vector.load %arg5[%c0_8, %c0_9] : memref<1x128xf32, #tpu.memory_space<vmem>>, vector<1x128xf32>
    %11 = arith.truncf %8 : vector<128x128xf32> to vector<128x128xbf16>
    %cst_10 = arith.constant dense<0.000000e+00> : vector<128x128xf32>
    %12 = tpu.matmul %11, %9, %cst_10 {dimension_numbers = #tpu.dot_dimension_numbers<[1], [0], [0], [1], [0, 0, 1, 1], [], []>} : vector<128x128xbf16>, vector<128x128xbf16>, vector<128x128xf32> -> vector<128x128xf32>
    %13 = vector.broadcast %10 : vector<1x128xf32> to vector<128x128xf32>
    %14 = arith.addf %12, %13 : vector<128x128xf32>
    %c0_11 = arith.constant 0 : index
    %c0_12 = arith.constant 0 : index
    %15 = vector.load %arg11[%c0_11, %c0_12] : memref<128x128xf32, #tpu.memory_space<vmem>>, vector<128x128xf32>
    tpu.vector_store %arg11[%c0_11, %c0_12], %14 {strides = array<i32>} : memref<128x128xf32, #tpu.memory_space<vmem>>, vector<128x128xf32>,
    %c0_13 = arith.constant 0 : index
    %c0_14 = arith.constant 0 : index
    %16 = vector.load %arg6[%c0_13, %c0_14] : memref<128x128xbf16, #tpu.memory_space<vmem>>, vector<128x128xbf16>
    %c0_15 = arith.constant 0 : index
    %c0_16 = arith.constant 0 : index
    %17 = vector.load %arg7[%c0_15, %c0_16] : memref<1x128xf32, #tpu.memory_space<vmem>>, vector<1x128xf32>
    %18 = arith.truncf %14 : vector<128x128xf32> to vector<128x128xbf16>
    %cst_17 = arith.constant dense<0.000000e+00> : vector<128x128xf32>
    %19 = tpu.matmul %18, %16, %cst_17 {dimension_numbers = #tpu.dot_dimension_numbers<[1], [0], [0], [1], [0, 0, 1, 1], [], []>} : vector<128x128xbf16>, vector<128x128xbf16>, vector<128x128xf32> -> vector<128x128xf32>
    %20 = vector.broadcast %17 : vector<1x128xf32> to vector<128x128xf32>
    %21 = arith.addf %19, %20 : vector<128x128xf32>
    %cst_18 = arith.constant 0.000000e+00 : f32
    %22 = vector.broadcast %cst_18 : f32 to vector<128x128xf32>
    %23 = arith.maximumf %21, %22 : vector<128x128xf32>
    %c0_19 = arith.constant 0 : index
    %c0_20 = arith.constant 0 : index
    %24 = vector.load %arg8[%c0_19, %c0_20] : memref<128x128xbf16, #tpu.memory_space<vmem>>, vector<128x128xbf16>
    %c0_21 = arith.constant 0 : index
    %c0_22 = arith.constant 0 : index
    %25 = vector.load %arg9[%c0_21, %c0_22] : memref<1x128xf32, #tpu.memory_space<vmem>>, vector<1x128xf32>
    %26 = arith.truncf %23 : vector<128x128xf32> to vector<128x128xbf16>
    %cst_23 = arith.constant dense<0.000000e+00> : vector<128x128xf32>
    %27 = tpu.matmul %26, %24, %cst_23 {dimension_numbers = #tpu.dot_dimension_numbers<[1], [0], [0], [1], [0, 0, 1, 1], [], []>} : vector<128x128xbf16>, vector<128x128xbf16>, vector<128x128xf32> -> vector<128x128xf32>
    %28 = vector.broadcast %25 : vector<1x128xf32> to vector<128x128xf32>
    %29 = arith.addf %27, %28 : vector<128x128xf32>
    %c0_24 = arith.constant 0 : index
    %c0_25 = arith.constant 0 : index
    %30 = vector.load %arg10[%c0_24, %c0_25] : memref<128x128xf32, #tpu.memory_space<vmem>>, vector<128x128xf32>
    tpu.vector_store %arg10[%c0_24, %c0_25], %29 {strides = array<i32>} : memref<128x128xf32, #tpu.memory_space<vmem>>, vector<128x128xf32>,
    return
  }
  func.func @transform_0(%arg0: i32) -> (i32, i32) {
    %c0_i32 = arith.constant 0 : i32
    %c0_i32_0 = arith.constant 0 : i32
    return %arg0, %c0_i32 : i32, i32
  }
  func.func @transform_1(%arg0: i32) -> (i32, i32) {
    %c0_i32 = arith.constant 0 : i32
    %c0_i32_0 = arith.constant 0 : i32
    %c0_i32_1 = arith.constant 0 : i32
    return %c0_i32, %c0_i32_0 : i32, i32
  }
  func.func @transform_2(%arg0: i32) -> (i32, i32) {
    %c0_i32 = arith.constant 0 : i32
    %c0_i32_0 = arith.constant 0 : i32
    %c0_i32_1 = arith.constant 0 : i32
    return %c0_i32, %c0_i32_0 : i32, i32
  }
  func.func @transform_3(%arg0: i32) -> (i32, i32) {
    %c0_i32 = arith.constant 0 : i32
    %c0_i32_0 = arith.constant 0 : i32
    %c0_i32_1 = arith.constant 0 : i32
    return %c0_i32, %c0_i32_0 : i32, i32
  }
  func.func @transform_4(%arg0: i32) -> (i32, i32) {
    %c0_i32 = arith.constant 0 : i32
    %c0_i32_0 = arith.constant 0 : i32
    %c0_i32_1 = arith.constant 0 : i32
    return %c0_i32, %c0_i32_0 : i32, i32
  }
  func.func @transform_5(%arg0: i32) -> (i32, i32) {
    %c0_i32 = arith.constant 0 : i32
    %c0_i32_0 = arith.constant 0 : i32
    %c0_i32_1 = arith.constant 0 : i32
    return %c0_i32, %c0_i32_0 : i32, i32
  }
  func.func @transform_6(%arg0: i32) -> (i32, i32) {
    %c0_i32 = arith.constant 0 : i32
    %c0_i32_0 = arith.constant 0 : i32
    %c0_i32_1 = arith.constant 0 : i32
    return %c0_i32, %c0_i32_0 : i32, i32
  }
  func.func @transform_7(%arg0: i32) -> (i32, i32) {
    %c0_i32 = arith.constant 0 : i32
    %c0_i32_0 = arith.constant 0 : i32
    %c0_i32_1 = arith.constant 0 : i32
    return %c0_i32, %c0_i32_0 : i32, i32
  }
  func.func @transform_8(%arg0: i32) -> (i32, i32) {
    %c0_i32 = arith.constant 0 : i32
    %c0_i32_0 = arith.constant 0 : i32
    %c0_i32_1 = arith.constant 0 : i32
    return %c0_i32, %c0_i32_0 : i32, i32
  }
  func.func @transform_9(%arg0: i32) -> (i32, i32) {
    %c0_i32 = arith.constant 0 : i32
    %c0_i32_0 = arith.constant 0 : i32
    return %arg0, %c0_i32 : i32, i32
  }
  func.func @transform_10(%arg0: i32) -> (i32, i32) {
    %c0_i32 = arith.constant 0 : i32
    %c0_i32_0 = arith.constant 0 : i32
    return %arg0, %c0_i32 : i32, i32
  }
}

</mosaic_0001>

<llo_original>
// kernel: sae_forward.1
$region0: #{sae_forward.1}
  #allocation0 [shape = 'u32[]', space=smem, size = 0x4, offset = 0x4, fixed_abs, tag = 'smem constant byte address 0x4 - core index']
  #allocation1 [shape = 'u32[72,128]{1,0:T(1,128)}', space=vmem, size = 0x9000, scoped, tag = 'internal scratch']
  %s0 = inlined_call_operand.vmem [shape: f32[256,64], index: 0, kind: input, shape index: {}]
  %s1 = inlined_call_operand.vmem [shape: bf16[64,128], index: 1, kind: input, shape index: {}]
  %s2 = inlined_call_operand.vmem [shape: f32[1,128], index: 2, kind: input, shape index: {}]
  %s3 = inlined_call_operand.vmem [shape: bf16[128,128], index: 3, kind: input, shape index: {}]
  %s4 = inlined_call_operand.vmem [shape: f32[1,128], index: 4, kind: input, shape index: {}]
  %s5 = inlined_call_operand.vmem [shape: bf16[128,128], index: 5, kind: input, shape index: {}]
  %s6 = inlined_call_operand.vmem [shape: f32[1,128], index: 6, kind: input, shape index: {}]
  %s7 = inlined_call_operand.vmem [shape: bf16[128,128], index: 7, kind: input, shape index: {}]
  %s8 = inlined_call_operand.vmem [shape: f32[1,128], index: 8, kind: input, shape index: {}]
  %s9 = inlined_call_operand.vmem [shape: f32[256,128], index: 9, kind: output, shape index: {0}]
  %s10 = inlined_call_operand.vmem [shape: f32[256,128], index: 10, kind: output, shape index: {1}]
  %11 = xla_tuple %s9, %s10
  %s12 = sld [smem:[#allocation0]]
  $region77: #{sae_forward.1} parent=0
    _
  %s14 = ssub.s32 1, %s12
  %s15 = scalar_select 0, %s14, %s12
  loop: start=0, step=1, limit=4
  $region2: #{sae_forward.1} parent=0 // loop_pre_header
    _
  $region3: #{sae_forward.1} parent=0 // loop_header
    %s17 = sphi 0, %s21
    %p18 = scmp.ge.s32.totalorder %s17, 4
    %s27 = sphi 0, %s29
    %s30 = sphi 0, %s27
    %s31 = sphi 0, %s30
    %s47 = sphi 0, %s31
    %s51 = sphi 0, %s51
    %s53 = sphi 0, %s51
    %s54 = sphi 0, %s53
    %s68 = sphi 0, %s54
    %s72 = sphi 0, %s72
    %s74 = sphi 0, %s72
    %s75 = sphi 0, %s74
    %s89 = sphi 0, %s75
    %s93 = sphi 0, %s93
    %s95 = sphi 0, %s93
    %s96 = sphi 0, %s95
    %s110 = sphi 0, %s96
    %s114 = sphi 0, %s114
    %s116 = sphi 0, %s114
    %s117 = sphi 0, %s116
    %s131 = sphi 0, %s117
    %s135 = sphi 0, %s135
    %s137 = sphi 0, %s135
    %s138 = sphi 0, %s137
    %s152 = sphi 0, %s138
    %s156 = sphi 0, %s156
    %s158 = sphi 0, %s156
    %s159 = sphi 0, %s158
    %s173 = sphi 0, %s159
    %s177 = sphi 0, %s177
    %s179 = sphi 0, %s177
    %s180 = sphi 0, %s179
    %s194 = sphi 0, %s180
    %s198 = sphi 0, %s198
    %s200 = sphi 0, %s198
    %s201 = sphi 0, %s200
    %s215 = sphi 0, %s201
    %s221 = sphi 0, %s223
    %s224 = sphi 0, %s221
    %s225 = sphi 0, %s224
    %s241 = sphi 0, %s225
    %s247 = sphi 0, %s249
    %s250 = sphi 0, %s247
    %s251 = sphi 0, %s250
    %s267 = sphi 0, %s251
  $region4: #{sae_forward.1} parent=0 // loop_header_branch
    %20 = sbr.rel (%p18) target = $region8
  $region5: #{sae_forward.1} parent=0 // loop_body
    %s22 = ssub.s32 %s17, 1
    %s23 = ssub.s32 %s17, 2
    %s24 = sadd.s32 %s17, 1
    %s25 = ssub.s32 %s17, %s24
    %p26 = scmp.eq.s32.totalorder %s25, 0
    %s28 = sadd.s32 %s27, 1
    %s29 = scalar_select %p26, %s27, %s28
    %p32 = pneg %p26
    %p33 = scmp.eq.s32.totalorder %s17, 1
    %p34 = por %p32, %p33
    %p35 = scmp.ne.s32.totalorder %s27, %s30
    %p36 = scmp.eq.s32.totalorder %s17, 0
    %p37 = por %p35, %p36
    %p38 = scmp.ne.s32.totalorder %s27, %s30
    %p39 = scmp.eq.s32.totalorder %s22, 1
    %p40 = por %p38, %p39
    %p41 = scmp.ne.s32.totalorder %s30, %s31
    %p42 = scmp.eq.s32.totalorder %s22, 0
    %p43 = por %p41, %p42
    %p44 = scmp.ne.s32.totalorder %s30, %s31
    %p45 = scmp.eq.s32.totalorder %s23, 1
    %p46 = por %p44, %p45
    %p48 = scmp.ne.s32.totalorder %s31, %s47
    %p49 = scmp.eq.s32.totalorder %s23, 0
    %p50 = por %p48, %p49
    %s52 = sadd.s32 %s51, 1
    %p55 = scmp.eq.s32.totalorder %s17, 1
    %p56 = scmp.ne.s32.totalorder %s51, %s53
    %p57 = scmp.eq.s32.totalorder %s17, 0
    %p58 = por %p56, %p57
    %p59 = scmp.ne.s32.totalorder %s51, %s53
    %p60 = scmp.eq.s32.totalorder %s22, 1
    %p61 = por %p59, %p60
    %p62 = scmp.ne.s32.totalorder %s53, %s54
    %p63 = scmp.eq.s32.totalorder %s22, 0
    %p64 = por %p62, %p63
    %p65 = scmp.ne.s32.totalorder %s53, %s54
    %p66 = scmp.eq.s32.totalorder %s23, 1
    %p67 = por %p65, %p66
    %p69 = scmp.ne.s32.totalorder %s54, %s68
    %p70 = scmp.eq.s32.totalorder %s23, 0
    %p71 = por %p69, %p70
    %s73 = sadd.s32 %s72, 1
    %p76 = scmp.eq.s32.totalorder %s17, 1
    %p77 = scmp.ne.s32.totalorder %s72, %s74
    %p78 = scmp.eq.s32.totalorder %s17, 0
    %p79 = por %p77, %p78
    %p80 = scmp.ne.s32.totalorder %s72, %s74
    %p81 = scmp.eq.s32.totalorder %s22, 1
    %p82 = por %p80, %p81
    %p83 = scmp.ne.s32.totalorder %s74, %s75
    %p84 = scmp.eq.s32.totalorder %s22, 0
    %p85 = por %p83, %p84
    %p86 = scmp.ne.s32.totalorder %s74, %s75
    %p87 = scmp.eq.s32.totalorder %s23, 1
    %p88 = por %p86, %p87
    %p90 = scmp.ne.s32.totalorder %s75, %s89
    %p91 = scmp.eq.s32.totalorder %s23, 0
    %p92 = por %p90, %p91
    %s94 = sadd.s32 %s93, 1
    %p97 = scmp.eq.s32.totalorder %s17, 1
    %p98 = scmp.ne.s32.totalorder %s93, %s95
    %p99 = scmp.eq.s32.totalorder %s17, 0
    %p100 = por %p98, %p99
    %p101 = scmp.ne.s32.totalorder %s93, %s95
    %p102 = scmp.eq.s32.totalorder %s22, 1
    %p103 = por %p101, %p102
    %p104 = scmp.ne.s32.totalorder %s95, %s96
    %p105 = scmp.eq.s32.totalorder %s22, 0
    %p106 = por %p104, %p105
    %p107 = scmp.ne.s32.totalorder %s95, %s96
    %p108 = scmp.eq.s32.totalorder %s23, 1
    %p109 = por %p107, %p108
    %p111 = scmp.ne.s32.totalorder %s96, %s110
    %p112 = scmp.eq.s32.totalorder %s23, 0
    %p113 = por %p111, %p112
    %s115 = sadd.s32 %s114, 1
    %p118 = scmp.eq.s32.totalorder %s17, 1
    %p119 = scmp.ne.s32.totalorder %s114, %s116
    %p120 = scmp.eq.s32.totalorder %s17, 0
    %p121 = por %p119, %p120
    %p122 = scmp.ne.s32.totalorder %s114, %s116
    %p123 = scmp.eq.s32.totalorder %s22, 1
    %p124 = por %p122, %p123
    %p125 = scmp.ne.s32.totalorder %s116, %s117
    %p126 = scmp.eq.s32.totalorder %s22, 0
    %p127 = por %p125, %p126
    %p128 = scmp.ne.s32.totalorder %s116, %s117
    %p129 = scmp.eq.s32.totalorder %s23, 1
    %p130 = por %p128, %p129
    %p132 = scmp.ne.s32.totalorder %s117, %s131
    %p133 = scmp.eq.s32.totalorder %s23, 0
    %p134 = por %p132, %p133
    %s136 = sadd.s32 %s135, 1
    %p139 = scmp.eq.s32.totalorder %s17, 1
    %p140 = scmp.ne.s32.totalorder %s135, %s137
    %p141 = scmp.eq.s32.totalorder %s17, 0
    %p142 = por %p140, %p141
    %p143 = scmp.ne.s32.totalorder %s135, %s137
    %p144 = scmp.eq.s32.totalorder %s22, 1
    %p145 = por %p143, %p144
    %p146 = scmp.ne.s32.totalorder %s137, %s138
    %p147 = scmp.eq.s32.totalorder %s22, 0
    %p148 = por %p146, %p147
    %p149 = scmp.ne.s32.totalorder %s137, %s138
    %p150 = scmp.eq.s32.totalorder %s23, 1
    %p151 = por %p149, %p150
    %p153 = scmp.ne.s32.totalorder %s138, %s152
    %p154 = scmp.eq.s32.totalorder %s23, 0
    %p155 = por %p153, %p154
    %s157 = sadd.s32 %s156, 1
    %p160 = scmp.eq.s32.totalorder %s17, 1
    %p161 = scmp.ne.s32.totalorder %s156, %s158
    %p162 = scmp.eq.s32.totalorder %s17, 0
    %p163 = por %p161, %p162
    %p164 = scmp.ne.s32.totalorder %s156, %s158
    %p165 = scmp.eq.s32.totalorder %s22, 1
    %p166 = por %p164, %p165
    %p167 = scmp.ne.s32.totalorder %s158, %s159
    %p168 = scmp.eq.s32.totalorder %s22, 0
    %p169 = por %p167, %p168
    %p170 = scmp.ne.s32.totalorder %s158, %s159
    %p171 = scmp.eq.s32.totalorder %s23, 1
    %p172 = por %p170, %p171
    %p174 = scmp.ne.s32.totalorder %s159, %s173
    %p175 = scmp.eq.s32.totalorder %s23, 0
    %p176 = por %p174, %p175
    %s178 = sadd.s32 %s177, 1
    %p181 = scmp.eq.s32.totalorder %s17, 1
    %p182 = scmp.ne.s32.totalorder %s177, %s179
    %p183 = scmp.eq.s32.totalorder %s17, 0
    %p184 = por %p182, %p183
    %p185 = scmp.ne.s32.totalorder %s177, %s179
    %p186 = scmp.eq.s32.totalorder %s22, 1
    %p187 = por %p185, %p186
    %p188 = scmp.ne.s32.totalorder %s179, %s180
    %p189 = scmp.eq.s32.totalorder %s22, 0
    %p190 = por %p188, %p189
    %p191 = scmp.ne.s32.totalorder %s179, %s180
    %p192 = scmp.eq.s32.totalorder %s23, 1
    %p193 = por %p191, %p192
    %p195 = scmp.ne.s32.totalorder %s180, %s194
    %p196 = scmp.eq.s32.totalorder %s23, 0
    %p197 = por %p195, %p196
    %s199 = sadd.s32 %s198, 1
    %p202 = scmp.eq.s32.totalorder %s17, 1
    %p203 = scmp.ne.s32.totalorder %s198, %s200
    %p204 = scmp.eq.s32.totalorder %s17, 0
    %p205 = por %p203, %p204
    %p206 = scmp.ne.s32.totalorder %s198, %s200
    %p207 = scmp.eq.s32.totalorder %s22, 1
    %p208 = por %p206, %p207
    %p209 = scmp.ne.s32.totalorder %s200, %s201
    %p210 = scmp.eq.s32.totalorder %s22, 0
    %p211 = por %p209, %p210
    %p212 = scmp.ne.s32.totalorder %s200, %s201
    %p213 = scmp.eq.s32.totalorder %s23, 1
    %p214 = por %p212, %p213
    %p216 = scmp.ne.s32.totalorder %s201, %s215
    %p217 = scmp.eq.s32.totalorder %s23, 0
    %p218 = por %p216, %p217
    %s219 = ssub.s32 %s17, %s24
    %p220 = scmp.eq.s32.totalorder %s219, 0
    %s222 = sadd.s32 %s221, 1
    %s223 = scalar_select %p220, %s221, %s222
    %p226 = pneg %p220
    %p227 = scmp.eq.s32.totalorder %s17, 1
    %p228 = por %p226, %p227
    %p229 = scmp.ne.s32.totalorder %s221, %s224
    %p230 = scmp.eq.s32.totalorder %s17, 0
    %p231 = por %p229, %p230
    %p232 = scmp.ne.s32.totalorder %s221, %s224
    %p233 = scmp.eq.s32.totalorder %s22, 1
    %p234 = por %p232, %p233
    %p235 = scmp.ne.s32.totalorder %s224, %s225
    %p236 = scmp.eq.s32.totalorder %s22, 0
    %p237 = por %p235, %p236
    %p238 = scmp.ne.s32.totalorder %s224, %s225
    %p239 = scmp.eq.s32.totalorder %s23, 1
    %p240 = por %p238, %p239
    %p242 = scmp.ne.s32.totalorder %s225, %s241
    %p243 = scmp.eq.s32.totalorder %s23, 0
    %p244 = por %p242, %p243
    %s245 = ssub.s32 %s17, %s24
    %p246 = scmp.eq.s32.totalorder %s245, 0
    %s248 = sadd.s32 %s247, 1
    %s249 = scalar_select %p246, %s247, %s248
    %p252 = pneg %p246
    %p253 = scmp.eq.s32.totalorder %s17, 1
    %p254 = por %p252, %p253
    %p255 = scmp.ne.s32.totalorder %s247, %s250
    %p256 = scmp.eq.s32.totalorder %s17, 0
    %p257 = por %p255, %p256
    %p258 = scmp.ne.s32.totalorder %s247, %s250
    %p259 = scmp.eq.s32.totalorder %s22, 1
    %p260 = por %p258, %p259
    %p261 = scmp.ne.s32.totalorder %s250, %s251
    %p262 = scmp.eq.s32.totalorder %s22, 0
    %p263 = por %p261, %p262
    %p264 = scmp.ne.s32.totalorder %s250, %s251
    %p265 = scmp.eq.s32.totalorder %s23, 1
    %p266 = por %p264, %p265
    %p268 = scmp.ne.s32.totalorder %s251, %s267
    %p269 = scmp.eq.s32.totalorder %s23, 0
    %p270 = por %p268, %p269
    %p271 = scmp.le.s32.totalorder 1, %s17
    %p272 = scmp.lt.s32.totalorder %s17, 3
    %p273 = pnand %p271, %p272
    %p274 = pneg %p273
    // Predicated region
    $region9: #{sae_forward.1} parent=5 // pred_check
      _
    $region10: #{sae_forward.1} parent=5 // pred_check_branch
      %276 = sbr.rel (%p273) target = $region12
    $region11: #{sae_forward.1} parent=5 // pred_region
      %s277 = ssub.s32 %s17, 1
      // Predicated region
      $region13: #{sae_forward.1} parent=11 // pred_check
        %p278 = pneg %p64
      $region14: #{sae_forward.1} parent=11 // pred_check_branch
        %280 = sbr.rel (%p278) target = $region16
      $region15: #{sae_forward.1} parent=11 // pred_region
        _
      $region16: #{sae_forward.1} parent=11 // pred_fallthru
        _
      // Predicated region
      $region17: #{sae_forward.1} parent=11 // pred_check
        %p281 = pneg %p85
      $region18: #{sae_forward.1} parent=11 // pred_check_branch
        %283 = sbr.rel (%p281) target = $region20
      $region19: #{sae_forward.1} parent=11 // pred_region
        _
      $region20: #{sae_forward.1} parent=11 // pred_fallthru
        _
      // Predicated region
      $region21: #{sae_forward.1} parent=11 // pred_check
        %p284 = pneg %p106
      $region22: #{sae_forward.1} parent=11 // pred_check_branch
        %286 = sbr.rel (%p284) target = $region24
      $region23: #{sae_forward.1} parent=11 // pred_region
        _
      $region24: #{sae_forward.1} parent=11 // pred_fallthru
        _
      // Predicated region
      $region25: #{sae_forward.1} parent=11 // pred_check
        %p287 = pneg %p127
      $region26: #{sae_forward.1} parent=11 // pred_check_branch
        %289 = sbr.rel (%p287) target = $region28
      $region27: #{sae_forward.1} parent=11 // pred_region
        _
      $region28: #{sae_forward.1} parent=11 // pred_fallthru
        _
      // Predicated region
      $region29: #{sae_forward.1} parent=11 // pred_check
        %p290 = pneg %p148
      $region30: #{sae_forward.1} parent=11 // pred_check_branch
        %292 = sbr.rel (%p290) target = $region32
      $region31: #{sae_forward.1} parent=11 // pred_region
        _
      $region32: #{sae_forward.1} parent=11 // pred_fallthru
        _
      // Predicated region
      $region33: #{sae_forward.1} parent=11 // pred_check
        %p293 = pneg %p169
      $region34: #{sae_forward.1} parent=11 // pred_check_branch
        %295 = sbr.rel (%p293) target = $region36
      $region35: #{sae_forward.1} parent=11 // pred_region
        _
      $region36: #{sae_forward.1} parent=11 // pred_fallthru
        _
      // Predicated region
      $region37: #{sae_forward.1} parent=11 // pred_check
        %p296 = pneg %p190
      $region38: #{sae_forward.1} parent=11 // pred_check_branch
        %298 = sbr.rel (%p296) target = $region40
      $region39: #{sae_forward.1} parent=11 // pred_region
        _
      $region40: #{sae_forward.1} parent=11 // pred_fallthru
        _
      // Predicated region
      $region41: #{sae_forward.1} parent=11 // pred_check
        %p299 = pneg %p211
      $region42: #{sae_forward.1} parent=11 // pred_check_branch
        %301 = sbr.rel (%p299) target = $region44
      $region43: #{sae_forward.1} parent=11 // pred_region
        _
      $region44: #{sae_forward.1} parent=11 // pred_fallthru
        _
    $region12: #{sae_forward.1} parent=5 // pred_fallthru
      _
    %p302 = scmp.lt.s32.totalorder %s17, 2
    // Predicated region
    $region45: #{sae_forward.1} parent=5 // pred_check
      %p303 = pneg %p302
    $region46: #{sae_forward.1} parent=5 // pred_check_branch
      %305 = sbr.rel (%p303) target = $region48
    $region47: #{sae_forward.1} parent=5 // pred_region
      // Predicated region
      $region49: #{sae_forward.1} parent=47 // pred_check
        %p306 = pneg %p37
      $region50: #{sae_forward.1} parent=47 // pred_check_branch
        %308 = sbr.rel (%p306) target = $region52
      $region51: #{sae_forward.1} parent=47 // pred_region
        %s309 = smul.u32 16, %s17
        %p310 = scmp.lt.s32.totalorder %s309, 31
        %s311 = scalar_select %p310, %s309, 31
        %s312 = smul.addr %s311, 8
        %s313 = scalar_lea.vmem %s0, %s312
        %s314 = smul.u32 16, %s17
      $region52: #{sae_forward.1} parent=47 // pred_fallthru
        _
    $region48: #{sae_forward.1} parent=5 // pred_fallthru
      _
    %p315 = scmp.le.s32.totalorder 1, %s17
    %p316 = scmp.lt.s32.totalorder %s17, 3
    %p317 = pnand %p315, %p316
    %p318 = pneg %p317
    // Predicated region
    $region53: #{sae_forward.1} parent=5 // pred_check
      _
    $region54: #{sae_forward.1} parent=5 // pred_check_branch
      %320 = sbr.rel (%p317) target = $region56
    $region55: #{sae_forward.1} parent=5 // pred_region
      %s321 = ssub.s32 %s17, 1
      %s322 = smul.u32 16, %s22
      %p323 = scmp.lt.s32.totalorder %s322, 31
      %s324 = scalar_select %p323, %s322, 31
      %s325 = smul.addr %s324, 8
      %s326 = scalar_lea.vmem %s0, %s325
      %p327 = pneg %p43
      %p328 = pneg %p40
      %p329 = pneg %p64
      %p330 = pneg %p61
      %p331 = pneg %p85
      %p332 = pneg %p82
      %p333 = pneg %p106
      %p334 = pneg %p103
      %p335 = pneg %p127
      %p336 = pneg %p124
      %p337 = pneg %p148
      %p338 = pneg %p145
      %p339 = pneg %p169
      %p340 = pneg %p166
      %p341 = pneg %p190
      %p342 = pneg %p187
      %p343 = pneg %p211
      %p344 = pneg %p208
      %p345 = pneg %p237
      %p346 = pneg %p234
      %s347 = smul.u32 16, %s22
      %p348 = scmp.lt.s32.totalorder %s347, 31
      %s349 = scalar_select %p348, %s347, 31
      %s350 = smul.addr %s349, 8
      %s351 = scalar_lea.vmem %s9, %s350
      %p352 = pneg %p263
      %p353 = pneg %p260
      %s354 = smul.u32 16, %s22
      %p355 = scmp.lt.s32.totalorder %s354, 31
      %s356 = scalar_select %p355, %s354, 31
      %s357 = smul.addr %s356, 8
      %s358 = scalar_lea.vmem %s10, %s357
      %s359 = smul.u32 16, %s22
      %p360 = scmp.lt.s32.totalorder %s359, 31
      %s361 = scalar_select %p360, %s359, 31
      %s362 = smul.addr %s361, 8
      %s363 = scalar_lea.vmem %s0, %s362
      %s364 = smul.u32 16, %s22
      %s365 = smul.u32 16, %s22
      %p366 = scmp.lt.s32.totalorder %s365, 31
      %s367 = scalar_select %p366, %s365, 31
      %s368 = smul.addr %s367, 8
      %s369 = scalar_lea.vmem %s9, %s368
      %s370 = smul.u32 16, %s22
      %s371 = smul.u32 16, %s22
      %p372 = scmp.lt.s32.totalorder %s371, 31
      %s373 = scalar_select %p372, %s371, 31
      %s374 = smul.addr %s373, 8
      %s375 = scalar_lea.vmem %s10, %s374
      %s376 = smul.u32 16, %s22
      %v378 = vld [vmem:[%s363] sm:$0xff]
      %v379 = vld [vmem:[%s363 + $0x8] sm:$0xff]
      %v380 = vld [vmem:[%s363 + $0x10] sm:$0xff]
      %v381 = vld [vmem:[%s363 + $0x18] sm:$0xff]
      %v382 = vld [vmem:[%s363 + $0x20] sm:$0xff]
      %v383 = vld [vmem:[%s363 + $0x28] sm:$0xff]
      %v384 = vld [vmem:[%s363 + $0x30] sm:$0xff]
      %v385 = vld [vmem:[%s363 + $0x38] sm:$0xff]
      %v386 = vld [vmem:[%s363 + $0x40] sm:$0xff]
      %v387 = vld [vmem:[%s363 + $0x48] sm:$0xff]
      %v388 = vld [vmem:[%s363 + $0x50] sm:$0xff]
      %v389 = vld [vmem:[%s363 + $0x58] sm:$0xff]
      %v390 = vld [vmem:[%s363 + $0x60] sm:$0xff]
      %v391 = vld [vmem:[%s363 + $0x68] sm:$0xff]
      %v392 = vld [vmem:[%s363 + $0x70] sm:$0xff]
      %v393 = vld [vmem:[%s363 + $0x78] sm:$0xff]
      %v394 = vld [vmem:[%s1] sm:$0xf]
      %v395 = vld [vmem:[%s1 + $0x4] sm:$0xf]
      %v396 = vld [vmem:[%s1 + $0x8] sm:$0xf]
      %v397 = vld [vmem:[%s1 + $0xc] sm:$0xf]
      %v398 = vld [vmem:[%s1 + $0x10] sm:$0xf]
      %v399 = vld [vmem:[%s1 + $0x14] sm:$0xf]
      %v400 = vld [vmem:[%s1 + $0x18] sm:$0xf]
      %v401 = vld [vmem:[%s1 + $0x1c] sm:$0xf]
      %v402 = vld [vmem:[%s2] sm:$0x1]
      %v403 = vpack.c.bf16 %v379, %v378
      %v404 = vpack.c.bf16 %v381, %v380
      %v405 = vpack.c.bf16 %v383, %v382
      %v406 = vpack.c.bf16 %v385, %v384
      %v407 = vpack.c.bf16 %v387, %v386
      %v408 = vpack.c.bf16 %v389, %v388
      %v409 = vpack.c.bf16 %v391, %v390
      %v410 = vpack.c.bf16 %v393, %v392
      %v412 = vperm.slane %v402, 0
      %v422 = vunpack.c.l.b16 %v394
      %v423 = vunpack.c.l.b16 %v395
      %v424 = vunpack.c.l.b16 %v396
      %v425 = vunpack.c.l.b16 %v397
      %v426 = vunpack.c.l.b16 %v398
      %v427 = vunpack.c.l.b16 %v399
      %v428 = vunpack.c.l.b16 %v400
      %v429 = vunpack.c.l.b16 %v401
      %v430 = vpack.c.b16 %v423, %v422
      %v431 = vpack.c.b16 %v425, %v424
      %v432 = vpack.c.b16 %v427, %v426
      %v433 = vpack.c.b16 %v429, %v428
      %vm438 = vcmask 523264
      %v440 = vsel %vm438, %v403, 0
      %v443 = vsel %vm438, %v404, 0
      %v446 = vsel %vm438, %v405, 0
      %v449 = vsel %vm438, %v406, 0
      %v452 = vsel %vm438, %v407, 0
      %v455 = vsel %vm438, %v408, 0
      %v458 = vsel %vm438, %v409, 0
      %v461 = vsel %vm438, %v410, 0
      %463 = vmatpush.bf16.msra.mxu0 0
      %464 = vmatpush.bf16.msra.mxu0 0
      %465 = vmatpush.bf16.msra.mxu0 0
      %466 = vmatpush.bf16.msra.mxu0 0
      %467 = vmatpush.bf16.msra.mxu0 %v433
      %468 = vmatpush.bf16.msra.mxu0 %v432
      %469 = vmatpush.bf16.msra.mxu0 %v431
      %470 = vmatpush.bf16.msra.mxu0 %v430
      %471 = vmatmul.bf16.gmra.mxu0 %v440
      %v472 = vpop.f32.mrf.mxu0
      %v473 = vadd.f32 %v412, %v472
      %v474 = vpop.f32.mrf.mxu0
      %v475 = vadd.f32 %v412, %v474
      %476 = vmatmul.bf16.gmra.mxu0 %v443
      %v477 = vpop.f32.mrf.mxu0
      %v478 = vadd.f32 %v412, %v477
      %v479 = vpop.f32.mrf.mxu0
      %v480 = vadd.f32 %v412, %v479
      %481 = vmatmul.bf16.gmra.mxu0 %v446
      %v482 = vpop.f32.mrf.mxu0
      %v483 = vadd.f32 %v412, %v482
      %v484 = vpop.f32.mrf.mxu0
      %v485 = vadd.f32 %v412, %v484
      %486 = vmatmul.bf16.gmra.mxu0 %v449
      %v487 = vpop.f32.mrf.mxu0
      %v488 = vadd.f32 %v412, %v487
      %v489 = vpop.f32.mrf.mxu0
      %v490 = vadd.f32 %v412, %v489
      %491 = vmatmul.bf16.gmra.mxu0 %v452
      %v492 = vpop.f32.mrf.mxu0
      %v493 = vadd.f32 %v412, %v492
      %v494 = vpop.f32.mrf.mxu0
      %v495 = vadd.f32 %v412, %v494
      %496 = vmatmul.bf16.gmra.mxu0 %v455
      %v497 = vpop.f32.mrf.mxu0
      %v498 = vadd.f32 %v412, %v497
      %v499 = vpop.f32.mrf.mxu0
      %v500 = vadd.f32 %v412, %v499
      %501 = vmatmul.bf16.gmra.mxu0 %v458
      %v502 = vpop.f32.mrf.mxu0
      %v503 = vadd.f32 %v412, %v502
      %v504 = vpop.f32.mrf.mxu0
      %v505 = vadd.f32 %v412, %v504
      %506 = vmatmul.bf16.gmra.mxu0 %v461
      %v507 = vpop.f32.mrf.mxu0
      %v508 = vadd.f32 %v412, %v507
      %v509 = vpop.f32.mrf.mxu0
      %v510 = vadd.f32 %v412, %v509
      %511 = vdwg.mxu0
      %v512 = vmax.f32 %v473, 0.0
      %v513 = vmax.f32 %v475, 0.0
      %v514 = vmax.f32 %v478, 0.0
      %v515 = vmax.f32 %v480, 0.0
      %v516 = vmax.f32 %v483, 0.0
      %v517 = vmax.f32 %v485, 0.0
      %v518 = vmax.f32 %v488, 0.0
      %v519 = vmax.f32 %v490, 0.0
      %v520 = vmax.f32 %v493, 0.0
      %v521 = vmax.f32 %v495, 0.0
      %v522 = vmax.f32 %v498, 0.0
      %v523 = vmax.f32 %v500, 0.0
      %v524 = vmax.f32 %v503, 0.0
      %v525 = vmax.f32 %v505, 0.0
      %v526 = vmax.f32 %v508, 0.0
      %v527 = vmax.f32 %v510, 0.0
      %v528 = vld [vmem:[%s3] sm:$0xf]
      %v529 = vld [vmem:[%s3 + $0x4] sm:$0xf]
      %v530 = vld [vmem:[%s3 + $0x8] sm:$0xf]
      %v531 = vld [vmem:[%s3 + $0xc] sm:$0xf]
      %v532 = vld [vmem:[%s3 + $0x10] sm:$0xf]
      %v533 = vld [vmem:[%s3 + $0x14] sm:$0xf]
      %v534 = vld [vmem:[%s3 + $0x18] sm:$0xf]
      %v535 = vld [vmem:[%s3 + $0x1c] sm:$0xf]
      %v536 = vld [vmem:[%s3 + $0x20] sm:$0xf]
      %v537 = vld [vmem:[%s3 + $0x24] sm:$0xf]
      %v538 = vld [vmem:[%s3 + $0x28] sm:$0xf]
      %v539 = vld [vmem:[%s3 + $0x2c] sm:$0xf]
      %v540 = vld [vmem:[%s3 + $0x30] sm:$0xf]
      %v541 = vld [vmem:[%s3 + $0x34] sm:$0xf]
      %v542 = vld [vmem:[%s3 + $0x38] sm:$0xf]
      %v543 = vld [vmem:[%s3 + $0x3c] sm:$0xf]
      %v544 = vld [vmem:[%s4] sm:$0x1]
      %v545 = vpack.c.bf16 %v513, %v512
      %v546 = vpack.c.bf16 %v515, %v514
      %v547 = vpack.c.bf16 %v517, %v516
      %v548 = vpack.c.bf16 %v519, %v518
      %v549 = vpack.c.bf16 %v521, %v520
      %v550 = vpack.c.bf16 %v523, %v522
      %v551 = vpack.c.bf16 %v525, %v524
      %v552 = vpack.c.bf16 %v527, %v526
      %v554 = vperm.slane %v544, 0
      %v572 = vunpack.c.l.b16 %v528
      %v573 = vunpack.c.l.b16 %v529
      %v574 = vunpack.c.l.b16 %v530
      %v575 = vunpack.c.l.b16 %v531
      %v576 = vunpack.c.l.b16 %v532
      %v577 = vunpack.c.l.b16 %v533
      %v578 = vunpack.c.l.b16 %v534
      %v579 = vunpack.c.l.b16 %v535
      %v580 = vunpack.c.l.b16 %v536
      %v581 = vunpack.c.l.b16 %v537
      %v582 = vunpack.c.l.b16 %v538
      %v583 = vunpack.c.l.b16 %v539
      %v584 = vunpack.c.l.b16 %v540
      %v585 = vunpack.c.l.b16 %v541
      %v586 = vunpack.c.l.b16 %v542
      %v587 = vunpack.c.l.b16 %v543
      %v588 = vpack.c.b16 %v573, %v572
      %v589 = vpack.c.b16 %v575, %v574
      %v590 = vpack.c.b16 %v577, %v576
      %v591 = vpack.c.b16 %v579, %v578
      %v592 = vpack.c.b16 %v581, %v580
      %v593 = vpack.c.b16 %v583, %v582
      %v594 = vpack.c.b16 %v585, %v584
      %v595 = vpack.c.b16 %v587, %v586
      %604 = vmatpush.bf16.msra.mxu0 %v595
      %605 = vmatpush.bf16.msra.mxu0 %v594
      %606 = vmatpush.bf16.msra.mxu0 %v593
      %607 = vmatpush.bf16.msra.mxu0 %v592
      %608 = vmatpush.bf16.msra.mxu0 %v591
      %609 = vmatpush.bf16.msra.mxu0 %v590
      %610 = vmatpush.bf16.msra.mxu0 %v589
      %611 = vmatpush.bf16.msra.mxu0 %v588
      %612 = vmatmul.bf16.gmra.mxu0 %v545
      %v613 = vpop.f32.mrf.mxu0
      %v614 = vadd.f32 %v554, %v613
      %v615 = vpop.f32.mrf.mxu0
      %v616 = vadd.f32 %v554, %v615
      %617 = vmatmul.bf16.gmra.mxu0 %v546
      %v618 = vpop.f32.mrf.mxu0
      %v619 = vadd.f32 %v554, %v618
      %v620 = vpop.f32.mrf.mxu0
      %v621 = vadd.f32 %v554, %v620
      %622 = vmatmul.bf16.gmra.mxu0 %v547
      %v623 = vpop.f32.mrf.mxu0
      %v624 = vadd.f32 %v554, %v623
      %v625 = vpop.f32.mrf.mxu0
      %v626 = vadd.f32 %v554, %v625
      %627 = vmatmul.bf16.gmra.mxu0 %v548
      %v628 = vpop.f32.mrf.mxu0
      %v629 = vadd.f32 %v554, %v628
      %v630 = vpop.f32.mrf.mxu0
      %v631 = vadd.f32 %v554, %v630
      %632 = vmatmul.bf16.gmra.mxu0 %v549
      %v633 = vpop.f32.mrf.mxu0
      %v634 = vadd.f32 %v554, %v633
      %v635 = vpop.f32.mrf.mxu0
      %v636 = vadd.f32 %v554, %v635
      %637 = vmatmul.bf16.gmra.mxu0 %v550
      %v638 = vpop.f32.mrf.mxu0
      %v639 = vadd.f32 %v554, %v638
      %v640 = vpop.f32.mrf.mxu0
      %v641 = vadd.f32 %v554, %v640
      %642 = vmatmul.bf16.gmra.mxu0 %v551
      %v643 = vpop.f32.mrf.mxu0
      %v644 = vadd.f32 %v554, %v643
      %v645 = vpop.f32.mrf.mxu0
      %v646 = vadd.f32 %v554, %v645
      %647 = vmatmul.bf16.gmra.mxu0 %v552
      %v648 = vpop.f32.mrf.mxu0
      %v649 = vadd.f32 %v554, %v648
      %v650 = vpop.f32.mrf.mxu0
      %v651 = vadd.f32 %v554, %v650
      %652 = vdwg.mxu0
      %653 = vst [vmem:[%s375] sm:$0xff] %v614
      %654 = vst [vmem:[%s375 + $0x8] sm:$0xff] %v616
      %655 = vst [vmem:[%s375 + $0x10] sm:$0xff] %v619
      %656 = vst [vmem:[%s375 + $0x18] sm:$0xff] %v621
      %657 = vst [vmem:[%s375 + $0x20] sm:$0xff] %v624
      %658 = vst [vmem:[%s375 + $0x28] sm:$0xff] %v626
      %659 = vst [vmem:[%s375 + $0x30] sm:$0xff] %v629
      %660 = vst [vmem:[%s375 + $0x38] sm:$0xff] %v631
      %661 = vst [vmem:[%s375 + $0x40] sm:$0xff] %v634
      %662 = vst [vmem:[%s375 + $0x48] sm:$0xff] %v636
      %663 = vst [vmem:[%s375 + $0x50] sm:$0xff] %v639
      %664 = vst [vmem:[%s375 + $0x58] sm:$0xff] %v641
      %665 = vst [vmem:[%s375 + $0x60] sm:$0xff] %v644
      %666 = vst [vmem:[%s375 + $0x68] sm:$0xff] %v646
      %667 = vst [vmem:[%s375 + $0x70] sm:$0xff] %v649
      %668 = vst [vmem:[%s375 + $0x78] sm:$0xff] %v651
      %v669 = vld [vmem:[%s5] sm:$0xf]
      %v670 = vld [vmem:[%s5 + $0x4] sm:$0xf]
      %v671 = vld [vmem:[%s5 + $0x8] sm:$0xf]
      %v672 = vld [vmem:[%s5 + $0xc] sm:$0xf]
      %v673 = vld [vmem:[%s5 + $0x10] sm:$0xf]
      %v674 = vld [vmem:[%s5 + $0x14] sm:$0xf]
      %v675 = vld [vmem:[%s5 + $0x18] sm:$0xf]
      %v676 = vld [vmem:[%s5 + $0x1c] sm:$0xf]
      %v677 = vld [vmem:[%s5 + $0x20] sm:$0xf]
      %v678 = vld [vmem:[%s5 + $0x24] sm:$0xf]
      %v679 = vld [vmem:[%s5 + $0x28] sm:$0xf]
      %v680 = vld [vmem:[%s5 + $0x2c] sm:$0xf]
      %v681 = vld [vmem:[%s5 + $0x30] sm:$0xf]
      %v682 = vld [vmem:[%s5 + $0x34] sm:$0xf]
      %v683 = vld [vmem:[%s5 + $0x38] sm:$0xf]
      %v684 = vld [vmem:[%s5 + $0x3c] sm:$0xf]
      %v685 = vld [vmem:[%s6] sm:$0x1]
      %v686 = vpack.c.bf16 %v616, %v614
      %v687 = vpack.c.bf16 %v621, %v619
      %v688 = vpack.c.bf16 %v626, %v624
      %v689 = vpack.c.bf16 %v631, %v629
      %v690 = vpack.c.bf16 %v636, %v634
      %v691 = vpack.c.bf16 %v641, %v639
      %v692 = vpack.c.bf16 %v646, %v644
      %v693 = vpack.c.bf16 %v651, %v649
      %v695 = vperm.slane %v685, 0
      %v713 = vunpack.c.l.b16 %v669
      %v714 = vunpack.c.l.b16 %v670
      %v715 = vunpack.c.l.b16 %v671
      %v716 = vunpack.c.l.b16 %v672
      %v717 = vunpack.c.l.b16 %v673
      %v718 = vunpack.c.l.b16 %v674
      %v719 = vunpack.c.l.b16 %v675
      %v720 = vunpack.c.l.b16 %v676
      %v721 = vunpack.c.l.b16 %v677
      %v722 = vunpack.c.l.b16 %v678
      %v723 = vunpack.c.l.b16 %v679
      %v724 = vunpack.c.l.b16 %v680
      %v725 = vunpack.c.l.b16 %v681
      %v726 = vunpack.c.l.b16 %v682
      %v727 = vunpack.c.l.b16 %v683
      %v728 = vunpack.c.l.b16 %v684
      %v729 = vpack.c.b16 %v714, %v713
      %v730 = vpack.c.b16 %v716, %v715
      %v731 = vpack.c.b16 %v718, %v717
      %v732 = vpack.c.b16 %v720, %v719
      %v733 = vpack.c.b16 %v722, %v721
      %v734 = vpack.c.b16 %v724, %v723
      %v735 = vpack.c.b16 %v726, %v725
      %v736 = vpack.c.b16 %v728, %v727
      %745 = vmatpush.bf16.msra.mxu0 %v736
      %746 = vmatpush.bf16.msra.mxu0 %v735
      %747 = vmatpush.bf16.msra.mxu0 %v734
      %748 = vmatpush.bf16.msra.mxu0 %v733
      %749 = vmatpush.bf16.msra.mxu0 %v732
      %750 = vmatpush.bf16.msra.mxu0 %v731
      %751 = vmatpush.bf16.msra.mxu0 %v730
      %752 = vmatpush.bf16.msra.mxu0 %v729
      %753 = vmatmul.bf16.gmra.mxu0 %v686
      %v754 = vpop.f32.mrf.mxu0
      %v755 = vadd.f32 %v695, %v754
      %v756 = vpop.f32.mrf.mxu0
      %v757 = vadd.f32 %v695, %v756
      %758 = vmatmul.bf16.gmra.mxu0 %v687
      %v759 = vpop.f32.mrf.mxu0
      %v760 = vadd.f32 %v695, %v759
      %v761 = vpop.f32.mrf.mxu0
      %v762 = vadd.f32 %v695, %v761
      %763 = vmatmul.bf16.gmra.mxu0 %v688
      %v764 = vpop.f32.mrf.mxu0
      %v765 = vadd.f32 %v695, %v764
      %v766 = vpop.f32.mrf.mxu0
      %v767 = vadd.f32 %v695, %v766
      %768 = vmatmul.bf16.gmra.mxu0 %v689
      %v769 = vpop.f32.mrf.mxu0
      %v770 = vadd.f32 %v695, %v769
      %v771 = vpop.f32.mrf.mxu0
      %v772 = vadd.f32 %v695, %v771
      %773 = vmatmul.bf16.gmra.mxu0 %v690
      %v774 = vpop.f32.mrf.mxu0
      %v775 = vadd.f32 %v695, %v774
      %v776 = vpop.f32.mrf.mxu0
      %v777 = vadd.f32 %v695, %v776
      %778 = vmatmul.bf16.gmra.mxu0 %v691
      %v779 = vpop.f32.mrf.mxu0
      %v780 = vadd.f32 %v695, %v779
      %v781 = vpop.f32.mrf.mxu0
      %v782 = vadd.f32 %v695, %v781
      %783 = vmatmul.bf16.gmra.mxu0 %v692
      %v784 = vpop.f32.mrf.mxu0
      %v785 = vadd.f32 %v695, %v784
      %v786 = vpop.f32.mrf.mxu0
      %v787 = vadd.f32 %v695, %v786
      %788 = vmatmul.bf16.gmra.mxu0 %v693
      %v789 = vpop.f32.mrf.mxu0
      %v790 = vadd.f32 %v695, %v789
      %v791 = vpop.f32.mrf.mxu0
      %v792 = vadd.f32 %v695, %v791
      %793 = vdwg.mxu0
      %v794 = vmax.f32 %v755, 0.0
      %v795 = vmax.f32 %v757, 0.0
      %v796 = vmax.f32 %v760, 0.0
      %v797 = vmax.f32 %v762, 0.0
      %v798 = vmax.f32 %v765, 0.0
      %v799 = vmax.f32 %v767, 0.0
      %v800 = vmax.f32 %v770, 0.0
      %v801 = vmax.f32 %v772, 0.0
      %v802 = vmax.f32 %v775, 0.0
      %v803 = vmax.f32 %v777, 0.0
      %v804 = vmax.f32 %v780, 0.0
      %v805 = vmax.f32 %v782, 0.0
      %v806 = vmax.f32 %v785, 0.0
      %v807 = vmax.f32 %v787, 0.0
      %v808 = vmax.f32 %v790, 0.0
      %v809 = vmax.f32 %v792, 0.0
      %v810 = vld [vmem:[%s7] sm:$0xf]
      %v811 = vld [vmem:[%s7 + $0x4] sm:$0xf]
      %v812 = vld [vmem:[%s7 + $0x8] sm:$0xf]
      %v813 = vld [vmem:[%s7 + $0xc] sm:$0xf]
      %v814 = vld [vmem:[%s7 + $0x10] sm:$0xf]
      %v815 = vld [vmem:[%s7 + $0x14] sm:$0xf]
      %v816 = vld [vmem:[%s7 + $0x18] sm:$0xf]
      %v817 = vld [vmem:[%s7 + $0x1c] sm:$0xf]
      %v818 = vld [vmem:[%s7 + $0x20] sm:$0xf]
      %v819 = vld [vmem:[%s7 + $0x24] sm:$0xf]
      %v820 = vld [vmem:[%s7 + $0x28] sm:$0xf]
      %v821 = vld [vmem:[%s7 + $0x2c] sm:$0xf]
      %v822 = vld [vmem:[%s7 + $0x30] sm:$0xf]
      %v823 = vld [vmem:[%s7 + $0x34] sm:$0xf]
      %v824 = vld [vmem:[%s7 + $0x38] sm:$0xf]
      %v825 = vld [vmem:[%s7 + $0x3c] sm:$0xf]
      %v826 = vld [vmem:[%s8] sm:$0x1]
      %v827 = vpack.c.bf16 %v795, %v794
      %v828 = vpack.c.bf16 %v797, %v796
      %v829 = vpack.c.bf16 %v799, %v798
      %v830 = vpack.c.bf16 %v801, %v800
      %v831 = vpack.c.bf16 %v803, %v802
      %v832 = vpack.c.bf16 %v805, %v804
      %v833 = vpack.c.bf16 %v807, %v806
      %v834 = vpack.c.bf16 %v809, %v808
      %v836 = vperm.slane %v826, 0
      %v854 = vunpack.c.l.b16 %v810
      %v855 = vunpack.c.l.b16 %v811
      %v856 = vunpack.c.l.b16 %v812
      %v857 = vunpack.c.l.b16 %v813
      %v858 = vunpack.c.l.b16 %v814
      %v859 = vunpack.c.l.b16 %v815
      %v860 = vunpack.c.l.b16 %v816
      %v861 = vunpack.c.l.b16 %v817
      %v862 = vunpack.c.l.b16 %v818
      %v863 = vunpack.c.l.b16 %v819
      %v864 = vunpack.c.l.b16 %v820
      %v865 = vunpack.c.l.b16 %v821
      %v866 = vunpack.c.l.b16 %v822
      %v867 = vunpack.c.l.b16 %v823
      %v868 = vunpack.c.l.b16 %v824
      %v869 = vunpack.c.l.b16 %v825
      %v870 = vpack.c.b16 %v855, %v854
      %v871 = vpack.c.b16 %v857, %v856
      %v872 = vpack.c.b16 %v859, %v858
      %v873 = vpack.c.b16 %v861, %v860
      %v874 = vpack.c.b16 %v863, %v862
      %v875 = vpack.c.b16 %v865, %v864
      %v876 = vpack.c.b16 %v867, %v866
      %v877 = vpack.c.b16 %v869, %v868
      %886 = vmatpush.bf16.msra.mxu0 %v877
      %887 = vmatpush.bf16.msra.mxu0 %v876
      %888 = vmatpush.bf16.msra.mxu0 %v875
      %889 = vmatpush.bf16.msra.mxu0 %v874
      %890 = vmatpush.bf16.msra.mxu0 %v873
      %891 = vmatpush.bf16.msra.mxu0 %v872
      %892 = vmatpush.bf16.msra.mxu0 %v871
      %893 = vmatpush.bf16.msra.mxu0 %v870
      %894 = vmatmul.bf16.gmra.mxu0 %v827
      %v895 = vpop.f32.mrf.mxu0
      %v896 = vadd.f32 %v836, %v895
      %v897 = vpop.f32.mrf.mxu0
      %v898 = vadd.f32 %v836, %v897
      %899 = vmatmul.bf16.gmra.mxu0 %v828
      %v900 = vpop.f32.mrf.mxu0
      %v901 = vadd.f32 %v836, %v900
      %v902 = vpop.f32.mrf.mxu0
      %v903 = vadd.f32 %v836, %v902
      %904 = vmatmul.bf16.gmra.mxu0 %v829
      %v905 = vpop.f32.mrf.mxu0
      %v906 = vadd.f32 %v836, %v905
      %v907 = vpop.f32.mrf.mxu0
      %v908 = vadd.f32 %v836, %v907
      %909 = vmatmul.bf16.gmra.mxu0 %v830
      %v910 = vpop.f32.mrf.mxu0
      %v911 = vadd.f32 %v836, %v910
      %v912 = vpop.f32.mrf.mxu0
      %v913 = vadd.f32 %v836, %v912
      %914 = vmatmul.bf16.gmra.mxu0 %v831
      %v915 = vpop.f32.mrf.mxu0
      %v916 = vadd.f32 %v836, %v915
      %v917 = vpop.f32.mrf.mxu0
      %v918 = vadd.f32 %v836, %v917
      %919 = vmatmul.bf16.gmra.mxu0 %v832
      %v920 = vpop.f32.mrf.mxu0
      %v921 = vadd.f32 %v836, %v920
      %v922 = vpop.f32.mrf.mxu0
      %v923 = vadd.f32 %v836, %v922
      %924 = vmatmul.bf16.gmra.mxu0 %v833
      %v925 = vpop.f32.mrf.mxu0
      %v926 = vadd.f32 %v836, %v925
      %v927 = vpop.f32.mrf.mxu0
      %v928 = vadd.f32 %v836, %v927
      %929 = vmatmul.bf16.gmra.mxu0 %v834
      %v930 = vpop.f32.mrf.mxu0
      %v931 = vadd.f32 %v836, %v930
      %v932 = vpop.f32.mrf.mxu0
      %v933 = vadd.f32 %v836, %v932
      %934 = vdwg.mxu0
      %935 = vst [vmem:[%s369] sm:$0xff] %v896
      %936 = vst [vmem:[%s369 + $0x8] sm:$0xff] %v898
      %937 = vst [vmem:[%s369 + $0x10] sm:$0xff] %v901
      %938 = vst [vmem:[%s369 + $0x18] sm:$0xff] %v903
      %939 = vst [vmem:[%s369 + $0x20] sm:$0xff] %v906
      %940 = vst [vmem:[%s369 + $0x28] sm:$0xff] %v908
      %941 = vst [vmem:[%s369 + $0x30] sm:$0xff] %v911
      %942 = vst [vmem:[%s369 + $0x38] sm:$0xff] %v913
      %943 = vst [vmem:[%s369 + $0x40] sm:$0xff] %v916
      %944 = vst [vmem:[%s369 + $0x48] sm:$0xff] %v918
      %945 = vst [vmem:[%s369 + $0x50] sm:$0xff] %v921
      %946 = vst [vmem:[%s369 + $0x58] sm:$0xff] %v923
      %947 = vst [vmem:[%s369 + $0x60] sm:$0xff] %v926
      %948 = vst [vmem:[%s369 + $0x68] sm:$0xff] %v928
      %949 = vst [vmem:[%s369 + $0x70] sm:$0xff] %v931
      %950 = vst [vmem:[%s369 + $0x78] sm:$0xff] %v933
      %s951 = smul.u32 16, %s22
      %p952 = scmp.lt.s32.totalorder %s951, 31
      %s953 = scalar_select %p952, %s951, 31
      %s954 = smul.addr %s953, 8
      %s955 = scalar_lea.vmem %s9, %s954
      %s956 = smul.u32 16, %s22
      %p957 = scmp.lt.s32.totalorder %s956, 31
      %s958 = scalar_select %p957, %s956, 31
      %s959 = smul.addr %s958, 8
      %s960 = scalar_lea.vmem %s10, %s959
      // Predicated region
      $region57: #{sae_forward.1} parent=55 // pred_check
        %p961 = pneg %p234
      $region58: #{sae_forward.1} parent=55 // pred_check_branch
        %963 = sbr.rel (%p961) target = $region60
      $region59: #{sae_forward.1} parent=55 // pred_region
        %s964 = smul.u32 16, %s22
      $region60: #{sae_forward.1} parent=55 // pred_fallthru
        _
      // Predicated region
      $region61: #{sae_forward.1} parent=55 // pred_check
        %p965 = pneg %p260
      $region62: #{sae_forward.1} parent=55 // pred_check_branch
        %967 = sbr.rel (%p965) target = $region64
      $region63: #{sae_forward.1} parent=55 // pred_region
        %s968 = smul.u32 16, %s22
      $region64: #{sae_forward.1} parent=55 // pred_fallthru
        _
    $region56: #{sae_forward.1} parent=5 // pred_fallthru
      _
    %p969 = scmp.le.s32.totalorder 2, %s17
    // Predicated region
    $region65: #{sae_forward.1} parent=5 // pred_check
      %p970 = pneg %p969
    $region66: #{sae_forward.1} parent=5 // pred_check_branch
      %972 = sbr.rel (%p970) target = $region68
    $region67: #{sae_forward.1} parent=5 // pred_region
      %s973 = ssub.s32 %s17, 2
      // Predicated region
      $region69: #{sae_forward.1} parent=67 // pred_check
        %p974 = pneg %p240
      $region70: #{sae_forward.1} parent=67 // pred_check_branch
        %976 = sbr.rel (%p974) target = $region72
      $region71: #{sae_forward.1} parent=67 // pred_region
        %s977 = smul.u32 16, %s23
        %p978 = scmp.lt.s32.totalorder %s977, 31
        %s979 = scalar_select %p978, %s977, 31
        %s980 = smul.addr %s979, 8
        %s981 = scalar_lea.vmem %s9, %s980
      $region72: #{sae_forward.1} parent=67 // pred_fallthru
        _
      // Predicated region
      $region73: #{sae_forward.1} parent=67 // pred_check
        %p982 = pneg %p266
      $region74: #{sae_forward.1} parent=67 // pred_check_branch
        %984 = sbr.rel (%p982) target = $region76
      $region75: #{sae_forward.1} parent=67 // pred_region
        %s985 = smul.u32 16, %s23
        %p986 = scmp.lt.s32.totalorder %s985, 31
        %s987 = scalar_select %p986, %s985, 31
        %s988 = smul.addr %s987, 8
        %s989 = scalar_lea.vmem %s10, %s988
      $region76: #{sae_forward.1} parent=67 // pred_fallthru
        _
    $region68: #{sae_forward.1} parent=5 // pred_fallthru
      _
  $region6: #{sae_forward.1} parent=0 // loop_footer
    %s21 = sadd.s32 1, %s17
  $region7: #{sae_forward.1} parent=0 // loop_footer_branch
    %16 = sbr.rel target = $region3
  $region8: #{sae_forward.1} parent=0 // loop_exit
    _

</llo_original>
